<compile_context>
chip_gen: v5e
topology: v5e:2x2
jax: 0.10.0
libtpu: 0.0.40
codegen_flags: <defaults>
</compile_context>

<pallas_src>
import jax
import jax.numpy as jnp
from jax.experimental import pallas as pl
from jax.experimental.pallas import tpu as pltpu

_LANE = 128
_ACC_ROWS = 256          # accumulator height cap (decoupled from tile height)


def _round_up(a, b):
    return (a + b - 1) // b * b


def _sublane_multiple(dtype):
    # Minimum sublane tile: f32 -> 8, bf16/f16 -> 16, int8/fp8 -> 32.
    return max(8, 32 // jnp.dtype(dtype).itemsize)


def _detect_num_cores():
    """2 on chips with two TensorCores sharing HBM (v7x), else 1 (v5e/v6e)."""
    try:
        kind = jax.devices()[0].device_kind.lower()
    except Exception:
        return 1
    return 2 if ("v7" in kind or "7x" in kind) else 1


def _as_rows(x):
    """Flatten to (rows, 128).  At most a <128-element tail pad is added (its value
    is irrelevant: the kernel masks against the true element count)."""
    flat = x.reshape(-1)
    n = flat.size
    rows = -(-n // _LANE)
    rem = rows * _LANE - n
    if rem:
        flat = jnp.pad(flat, (0, rem))
    return flat.reshape(rows, _LANE), n


def _combined2x_partials(l1, o1, l2, o2, *, max_tile_rows, n_cores, core_parallel):
    """Returns per-core per-position partial sums for both criteria plus element counts."""
    l1s, n1 = _as_rows(l1)
    o1s, _ = _as_rows(o1)
    l2s, n2 = _as_rows(l2)
    o2s, _ = _as_rows(o2)

    rows1, rows2 = l1s.shape[0], l2s.shape[0]
    rows_max = max(rows1, rows2)

    sub = max(_sublane_multiple(t.dtype) for t in (l1s, o1s, l2s, o2s))
    if rows_max <= _ACC_ROWS:
        tile_rows = _round_up(rows_max, sub)          # single small tile
        acc_rows = tile_rows
    else:
        acc_rows = _ACC_ROWS                           # fixed-size accumulator
        tile_rows = min(_round_up(max_tile_rows, acc_rows),
                        _round_up(rows_max, acc_rows))
    n_fold = tile_rows // acc_rows
    tile_elems = tile_rows * _LANE

    steps_total = -(-rows_max // tile_rows)
    steps = -(-steps_total // n_cores)                 # steps per core
    last_blk1 = -(-rows1 // tile_rows) - 1
    last_blk2 = -(-rows2 // tile_rows) - 1

    def in_spec(last_blk):
        # Clamp: once a criterion is exhausted its block index stays constant and
        # Pallas skips the re-fetch -> no extra HBM traffic when n1 != n2.
        return pl.BlockSpec(
            (tile_rows, _LANE),
            lambda c, i, _lb=last_blk: (jnp.minimum(c * steps + i, _lb), 0))

    def kernel(l1_ref, o1_ref, l2_ref, o2_ref, s1_ref, s2_ref):
        c = pl.program_id(0)
        i = pl.program_id(1)

        @pl.when(i == 0)
        def _init():
            s1_ref[...] = jnp.zeros_like(s1_ref)
            s2_ref[...] = jnp.zeros_like(s2_ref)

        # Global flat element index for each tile position, computed from the
        # UN-clamped step so clamped/repeated blocks, ragged tails and partial
        # edge-block garbage all mask to an exact zero contribution.
        # (int32 index math: supports tensors up to 2**31 elements.)
        g = c * steps + i
        row = jax.lax.broadcasted_iota(jnp.int32, (tile_rows, _LANE), 0)
        lane = jax.lax.broadcasted_iota(jnp.int32, (tile_rows, _LANE), 1)
        idx = g * tile_elems + row * _LANE + lane

        def fold_into(acc_ref, term):
            if n_fold > 1:
                term = term.reshape(n_fold, acc_rows, _LANE).sum(axis=0)
            acc_ref[...] += term.reshape(acc_ref.shape)

        # criterion 1: MSE -> per-position squared error (VALU only).
        d = o1_ref[...].astype(jnp.float32) - l1_ref[...].astype(jnp.float32)
        fold_into(s1_ref, jnp.where(idx < n1, d * d, 0.0))

        # criterion 2: BCE-with-logits, stable form max(z,0) - z*y + log1p(exp(-|z|)).
        z = o2_ref[...].astype(jnp.float32)
        y = l2_ref[...].astype(jnp.float32)
        bce = jnp.maximum(z, 0.0) - z * y + jnp.log1p(jnp.exp(-jnp.abs(z)))
        fold_into(s2_ref, jnp.where(idx < n2, bce, 0.0))

    axis0 = pltpu.CORE_PARALLEL if core_parallel else "parallel"
    acc_spec = pl.BlockSpec((1, acc_rows, _LANE), lambda c, i: (c, 0, 0))

    out1, out2 = pl.pallas_call(
        kernel,
        out_shape=(jax.ShapeDtypeStruct((n_cores, acc_rows, _LANE), jnp.float32),
                   jax.ShapeDtypeStruct((n_cores, acc_rows, _LANE), jnp.float32)),
        grid_spec=pltpu.PrefetchScalarGridSpec(
            num_scalar_prefetch=0,
            grid=(n_cores, steps),
            in_specs=[in_spec(last_blk1), in_spec(last_blk1),
                      in_spec(last_blk2), in_spec(last_blk2)],
            out_specs=[acc_spec, acc_spec],
        ),
        compiler_params=pltpu.CompilerParams(
            dimension_semantics=(axis0, "arbitrary"),
            vmem_limit_bytes=32 * 1024 * 1024),
    )(l1s, o1s, l2s, o2s)

    return out1, out2, n1, n2


def combined2x_loss(labels, output, w_1, w_2, *, max_tile_rows=2048, n_cores=None):
    """labels/output are pairs (l1, l2) / (o1, o2).
    Returns w_1 * MSE(l1, o1) + w_2 * BCEWithLogits(l2, o2) (both mean-reduced)."""
    l1, l2 = labels
    o1, o2 = output
    assert l1.size == o1.size and l1.size > 0
    assert l2.size == o2.size and l2.size > 0

    auto_cores = _detect_num_cores()
    if n_cores is None:
        n_cores = auto_cores
    # CORE_PARALLEL only when axis 0 really maps one block per physical TensorCore;
    # otherwise plain "parallel" degrades gracefully to a serial loop.
    core_parallel = (n_cores > 1) and (n_cores == auto_cores)

    out1, out2, n1, n2 = _combined2x_partials(
        l1, o1, l2, o2, max_tile_rows=max_tile_rows, n_cores=n_cores,
        core_parallel=core_parallel)

    # Tiny finalize on (n_cores, acc_rows, 128) partials.
    s1 = jnp.sum(out1)
    s2 = jnp.sum(out2)
    return w_1 * s1 / n1 + w_2 * s2 / n2


def _reference(labels, output, w_1, w_2):
    l1, l2 = labels
    o1, o2 = output
    mse = jnp.mean((o1.astype(jnp.float32) - l1.astype(jnp.float32)) ** 2)
    z = o2.astype(jnp.float32)
    y = l2.astype(jnp.float32)
    bce = jnp.mean(jnp.maximum(z, 0.0) - z * y + jnp.log1p(jnp.exp(-jnp.abs(z))))
    return w_1 * mse + w_2 * bce


if __name__ == "__main__":
    key = jax.random.PRNGKey(0)
    k1, k2, k3, k4, k5, k6 = jax.random.split(key, 6)

    # PyTorch-style NCHW tensors: batch=2, channels=4, spatial=16x16.
    shape = (2, 4, 16, 16)
    labels0 = jax.random.normal(k1, shape, dtype=jnp.float32)            # regression targets
    output0 = jax.random.normal(k2, shape, dtype=jnp.float32)            # predictions
    labels1 = jax.random.bernoulli(k3, 0.3, shape).astype(jnp.float32)   # binary targets
    output1 = jax.random.normal(k4, shape, dtype=jnp.float32)            # logits
    w_1, w_2 = 0.7, 1.3

    loss = combined2x_loss((labels0, labels1), (output0, output1), w_1, w_2)
    loss = jax.block_until_ready(loss)
    ref = _reference((labels0, labels1), (output0, output1), w_1, w_2)
    assert jnp.allclose(loss, ref, rtol=1e-5, atol=1e-5), (loss, ref)

    # Exercise the multi-core grid path and the n1 != n2 / ragged-tail masking path
    # (1155 elements is not a multiple of 128) on whatever hardware we are on.
    shape_b = (3, 5, 7, 11)
    labels1b = jax.random.bernoulli(k5, 0.4, shape_b).astype(jnp.float32)
    output1b = jax.random.normal(k6, shape_b, dtype=jnp.float32)
    loss2 = combined2x_loss((labels0, labels1b), (output0, output1b), w_1, w_2, n_cores=2)
    loss2 = jax.block_until_ready(loss2)
    ref2 = _reference((labels0, labels1b), (output0, output1b), w_1, w_2)
    assert jnp.allclose(loss2, ref2, rtol=1e-5, atol=1e-5), (loss2, ref2)

    print("KERNEL_OK")
</pallas_src>

<mosaic_0001>
module attributes {stable_mosaic.version = 11 : i64} {
  func.func @kernel(%arg0: i32, %arg1: i32, %arg2: memref<16x128xf32, #tpu.memory_space<vmem>>, %arg3: memref<16x128xf32, #tpu.memory_space<vmem>>, %arg4: memref<16x128xf32, #tpu.memory_space<vmem>>, %arg5: memref<16x128xf32, #tpu.memory_space<vmem>>, %arg6: memref<1x16x128xf32, #tpu.memory_space<vmem>>, %arg7: memref<1x16x128xf32, #tpu.memory_space<vmem>>) attributes {dimension_semantics = [#tpu.dimension_semantics<parallel>, #tpu.dimension_semantics<arbitrary>], iteration_bounds = array<i64: 1, 1>, scalar_prefetch = 0 : i64, scratch_operands = 0 : i64, tpu.core_type = #tpu.core_type<tc>, window_params = [{transform_indices = @transform_0, window_bounds = array<i64: 16, 128>}, {transform_indices = @transform_1, window_bounds = array<i64: 16, 128>}, {transform_indices = @transform_2, window_bounds = array<i64: 16, 128>}, {transform_indices = @transform_3, window_bounds = array<i64: 16, 128>}, {transform_indices = @transform_4, window_bounds = array<i64: 1, 16, 128>}, {transform_indices = @transform_5, window_bounds = array<i64: 1, 16, 128>}]} {
    %c0_i32 = arith.constant 0 : i32
    %0 = arith.cmpi eq, %arg1, %c0_i32 : i32
    %1 = arith.extui %0 : i1 to i32
    %c0_i32_0 = arith.constant 0 : i32
    %2 = arith.cmpi ne, %1, %c0_i32_0 : i32
    scf.if %2 {
      %cst_25 = arith.constant 0.000000e+00 : f32
      %45 = vector.broadcast %cst_25 : f32 to vector<1x16x128xf32>
      %c0_26 = arith.constant 0 : index
      %c0_27 = arith.constant 0 : index
      %c0_28 = arith.constant 0 : index
      %46 = vector.load %arg6[%c0_26, %c0_27, %c0_28] : memref<1x16x128xf32, #tpu.memory_space<vmem>>, vector<1x16x128xf32>
      tpu.vector_store %arg6[%c0_26, %c0_27, %c0_28], %45 {strides = array<i32>} : memref<1x16x128xf32, #tpu.memory_space<vmem>>, vector<1x16x128xf32>,
      %cst_29 = arith.constant 0.000000e+00 : f32
      %47 = vector.broadcast %cst_29 : f32 to vector<1x16x128xf32>
      %c0_30 = arith.constant 0 : index
      %c0_31 = arith.constant 0 : index
      %c0_32 = arith.constant 0 : index
      %48 = vector.load %arg7[%c0_30, %c0_31, %c0_32] : memref<1x16x128xf32, #tpu.memory_space<vmem>>, vector<1x16x128xf32>
      tpu.vector_store %arg7[%c0_30, %c0_31, %c0_32], %47 {strides = array<i32>} : memref<1x16x128xf32, #tpu.memory_space<vmem>>, vector<1x16x128xf32>,
    } else {
    }
    %c1_i32 = arith.constant 1 : i32
    %3 = arith.muli %arg0, %c1_i32 : i32
    %4 = arith.addi %3, %arg1 : i32
    %5 = tpu.iota {dimensions = array<i32: 0>} : vector<16x128xi32>
    %6 = tpu.iota {dimensions = array<i32: 1>} : vector<16x128xi32>
    %c2048_i32 = arith.constant 2048 : i32
    %7 = arith.muli %4, %c2048_i32 : i32
    %c128_i32 = arith.constant 128 : i32
    %8 = vector.broadcast %c128_i32 : i32 to vector<16x128xi32>
    %9 = arith.muli %5, %8 : vector<16x128xi32>
    %10 = vector.broadcast %7 : i32 to vector<16x128xi32>
    %11 = arith.addi %10, %9 : vector<16x128xi32>
    %12 = arith.addi %11, %6 : vector<16x128xi32>
    %c0 = arith.constant 0 : index
    %c0_1 = arith.constant 0 : index
    %13 = vector.load %arg3[%c0, %c0_1] : memref<16x128xf32, #tpu.memory_space<vmem>>, vector<16x128xf32>
    %c0_2 = arith.constant 0 : index
    %c0_3 = arith.constant 0 : index
    %14 = vector.load %arg2[%c0_2, %c0_3] : memref<16x128xf32, #tpu.memory_space<vmem>>, vector<16x128xf32>
    %15 = arith.subf %13, %14 : vector<16x128xf32>
    %c2048_i32_4 = arith.constant 2048 : i32
    %16 = vector.broadcast %c2048_i32_4 : i32 to vector<16x128xi32>
    %17 = arith.cmpi slt, %12, %16 : vector<16x128xi32>
    %18 = arith.mulf %15, %15 : vector<16x128xf32>
    %cst = arith.constant 0.000000e+00 : f32
    %19 = vector.broadcast %cst : f32 to vector<16x128xf32>
    %20 = arith.select %17, %18, %19 : vector<16x128xi1>, vector<16x128xf32>
    %c0_5 = arith.constant 0 : index
    %c0_6 = arith.constant 0 : index
    %c0_7 = arith.constant 0 : index
    %21 = vector.load %arg6[%c0_5, %c0_6, %c0_7] : memref<1x16x128xf32, #tpu.memory_space<vmem>>, vector<1x16x128xf32>
    %22 = vector.shape_cast %20 : vector<16x128xf32> to vector<1x16x128xf32>
    %23 = arith.addf %21, %22 : vector<1x16x128xf32>
    %c0_8 = arith.constant 0 : index
    %c0_9 = arith.constant 0 : index
    %c0_10 = arith.constant 0 : index
    %24 = vector.load %arg6[%c0_8, %c0_9, %c0_10] : memref<1x16x128xf32, #tpu.memory_space<vmem>>, vector<1x16x128xf32>
    tpu.vector_store %arg6[%c0_8, %c0_9, %c0_10], %23 {strides = array<i32>} : memref<1x16x128xf32, #tpu.memory_space<vmem>>, vector<1x16x128xf32>,
    %c0_11 = arith.constant 0 : index
    %c0_12 = arith.constant 0 : index
    %25 = vector.load %arg5[%c0_11, %c0_12] : memref<16x128xf32, #tpu.memory_space<vmem>>, vector<16x128xf32>
    %c0_13 = arith.constant 0 : index
    %c0_14 = arith.constant 0 : index
    %26 = vector.load %arg4[%c0_13, %c0_14] : memref<16x128xf32, #tpu.memory_space<vmem>>, vector<16x128xf32>
    %cst_15 = arith.constant 0.000000e+00 : f32
    %27 = vector.broadcast %cst_15 : f32 to vector<16x128xf32>
    %28 = arith.maximumf %25, %27 : vector<16x128xf32>
    %29 = arith.mulf %25, %26 : vector<16x128xf32>
    %30 = arith.subf %28, %29 : vector<16x128xf32>
    %31 = math.absf %25 : vector<16x128xf32>
    %cst_16 = arith.constant 0.000000e+00 : f32
    %32 = vector.broadcast %cst_16 : f32 to vector<16x128xf32>
    %33 = arith.subf %32, %31 : vector<16x128xf32>
    %34 = math.exp %33 : vector<16x128xf32>
    %35 = math.log1p %34 : vector<16x128xf32>
    %36 = arith.addf %30, %35 : vector<16x128xf32>
    %c2048_i32_17 = arith.constant 2048 : i32
    %37 = vector.broadcast %c2048_i32_17 : i32 to vector<16x128xi32>
    %38 = arith.cmpi slt, %12, %37 : vector<16x128xi32>
    %cst_18 = arith.constant 0.000000e+00 : f32
    %39 = vector.broadcast %cst_18 : f32 to vector<16x128xf32>
    %40 = arith.select %38, %36, %39 : vector<16x128xi1>, vector<16x128xf32>
    %c0_19 = arith.constant 0 : index
    %c0_20 = arith.constant 0 : index
    %c0_21 = arith.constant 0 : index
    %41 = vector.load %arg7[%c0_19, %c0_20, %c0_21] : memref<1x16x128xf32, #tpu.memory_space<vmem>>, vector<1x16x128xf32>
    %42 = vector.shape_cast %40 : vector<16x128xf32> to vector<1x16x128xf32>
    %43 = arith.addf %41, %42 : vector<1x16x128xf32>
    %c0_22 = arith.constant 0 : index
    %c0_23 = arith.constant 0 : index
    %c0_24 = arith.constant 0 : index
    %44 = vector.load %arg7[%c0_22, %c0_23, %c0_24] : memref<1x16x128xf32, #tpu.memory_space<vmem>>, vector<1x16x128xf32>
    tpu.vector_store %arg7[%c0_22, %c0_23, %c0_24], %43 {strides = array<i32>} : memref<1x16x128xf32, #tpu.memory_space<vmem>>, vector<1x16x128xf32>,
    return
  }
  func.func @transform_0(%arg0: i32, %arg1: i32) -> (i32, i32) {
    %c1_i32 = arith.constant 1 : i32
    %0 = arith.muli %arg0, %c1_i32 : i32
    %1 = arith.addi %0, %arg1 : i32
    %c0_i32 = arith.constant 0 : i32
    %2 = arith.minsi %1, %c0_i32 : i32
    %c0_i32_0 = arith.constant 0 : i32
    %c0_i32_1 = arith.constant 0 : i32
    return %2, %c0_i32_0 : i32, i32
  }
  func.func @transform_1(%arg0: i32, %arg1: i32) -> (i32, i32) {
    %c1_i32 = arith.constant 1 : i32
    %0 = arith.muli %arg0, %c1_i32 : i32
    %1 = arith.addi %0, %arg1 : i32
    %c0_i32 = arith.constant 0 : i32
    %2 = arith.minsi %1, %c0_i32 : i32
    %c0_i32_0 = arith.constant 0 : i32
    %c0_i32_1 = arith.constant 0 : i32
    return %2, %c0_i32_0 : i32, i32
  }
  func.func @transform_2(%arg0: i32, %arg1: i32) -> (i32, i32) {
    %c1_i32 = arith.constant 1 : i32
    %0 = arith.muli %arg0, %c1_i32 : i32
    %1 = arith.addi %0, %arg1 : i32
    %c0_i32 = arith.constant 0 : i32
    %2 = arith.minsi %1, %c0_i32 : i32
    %c0_i32_0 = arith.constant 0 : i32
    %c0_i32_1 = arith.constant 0 : i32
    return %2, %c0_i32_0 : i32, i32
  }
  func.func @transform_3(%arg0: i32, %arg1: i32) -> (i32, i32) {
    %c1_i32 = arith.constant 1 : i32
    %0 = arith.muli %arg0, %c1_i32 : i32
    %1 = arith.addi %0, %arg1 : i32
    %c0_i32 = arith.constant 0 : i32
    %2 = arith.minsi %1, %c0_i32 : i32
    %c0_i32_0 = arith.constant 0 : i32
    %c0_i32_1 = arith.constant 0 : i32
    return %2, %c0_i32_0 : i32, i32
  }
  func.func @transform_4(%arg0: i32, %arg1: i32) -> (i32, i32, i32) {
    %c0_i32 = arith.constant 0 : i32
    %c0_i32_0 = arith.constant 0 : i32
    %c0_i32_1 = arith.constant 0 : i32
    return %arg0, %c0_i32, %c0_i32_0 : i32, i32, i32
  }
  func.func @transform_5(%arg0: i32, %arg1: i32) -> (i32, i32, i32) {
    %c0_i32 = arith.constant 0 : i32
    %c0_i32_0 = arith.constant 0 : i32
    %c0_i32_1 = arith.constant 0 : i32
    return %arg0, %c0_i32, %c0_i32_0 : i32, i32, i32
  }
}

</mosaic_0001>

<llo_original>
// kernel: tpu_custom_call.1
$region0: #{tpu_custom_call.1}
  #allocation0 [shape = 'u32[]', space=smem, size = 0x4, offset = 0x4, fixed_abs, tag = 'smem constant byte address 0x4 - core index']
  #allocation1 [shape = 'u32[72,128]{1,0:T(1,128)}', space=vmem, size = 0x9000, scoped, tag = 'internal scratch']
  %s0 = inlined_call_operand.hbm [shape: f32[16,128], index: 0, kind: input, shape index: {}]
  %s1 = inlined_call_operand.hbm [shape: f32[16,128], index: 1, kind: input, shape index: {}]
  %s2 = inlined_call_operand.hbm [shape: f32[16,128], index: 2, kind: input, shape index: {}]
  %s3 = inlined_call_operand.hbm [shape: f32[16,128], index: 3, kind: input, shape index: {}]
  %s4 = inlined_call_operand.hbm [shape: f32[1,16,128], index: 4, kind: output, shape index: {0}]
  %s5 = inlined_call_operand.hbm [shape: f32[1,16,128], index: 5, kind: output, shape index: {1}]
  %6 = xla_tuple %s4, %s5
  %s7 = sld [smem:[#allocation0]]
  $region54: #{tpu_custom_call.1} parent=0
    _
  %s9 = ssub.s32 1, %s7
  %s10 = scalar_select 0, %s9, %s7
  $region1: #{tpu_custom_call.1} parent=0
    #allocation2 [shape = 'u8[8192]{0}', space=vmem, size = 0x2000, scoped, tag = 'input window, operand 0, single buffered']
    #allocation3 [shape = 's32[1]{0}', space=sflag, size = 0x4, scoped, tag = 'scoped memory for tpu_custom_call.1']
    #allocation4 [shape = 's32[1]{0}', space=sflag, size = 0x4, scoped, tag = 'scoped memory for tpu_custom_call.1']
    #allocation5 [shape = 'u8[8192]{0}', space=vmem, size = 0x2000, scoped, tag = 'input window, operand 1, single buffered']
    #allocation6 [shape = 's32[1]{0}', space=sflag, size = 0x4, scoped, tag = 'scoped memory for tpu_custom_call.1']
    #allocation7 [shape = 'u8[8192]{0}', space=vmem, size = 0x2000, scoped, tag = 'input window, operand 2, single buffered']
    #allocation8 [shape = 'u8[8192]{0}', space=vmem, size = 0x2000, scoped, tag = 'input window, operand 3, single buffered']
    #allocation9 [shape = 's32[1]{0}', space=sflag, size = 0x4, scoped, tag = 'scoped memory for tpu_custom_call.1']
    #allocation10 [shape = 'u8[8192]{0}', space=vmem, size = 0x2000, scoped, tag = 'output window, operand 0, single buffered']
    #allocation11 [shape = 'u8[8192]{0}', space=vmem, size = 0x2000, scoped, tag = 'output window, operand 1, single buffered']
    #allocation12 [shape = 's32[1]{0}', space=sflag, size = 0x4, scoped, tag = 'scoped memory for tpu_custom_call.1']
    %11 = vsyncpa [#allocation3], 0
    %12 = vsyncpa [#allocation6], 0
    %13 = vsyncpa [#allocation9], 0
    %14 = vsyncpa [#allocation4], 0
    %15 = vsyncpa [#allocation12], 0
    // Predicated region
    $region2: #{tpu_custom_call.1} parent=1 // pred_check
      _
    $region3: #{tpu_custom_call.1} parent=1 // pred_check_branch
      %17 = sbr.rel (0) target = $region5
    $region4: #{tpu_custom_call.1} parent=1 // pred_region
      %s18 = sadd.s32 0, 0
      %p19 = scmp.lt.s32.totalorder %s18, 0
      %s20 = scalar_select %p19, %s18, 0
      %s21 = smul.u32 2, %s20
      %23 = vsyncadd [#allocation3], 0
      %s24 = smul.addr %s21, 8
      %s25 = scalar_lea.hbm %s0, %s24
      %s26 = sshll.u32 %s25, 4
      %s27 = int_to_ptr.hbm [resolvable:$true] %s26
      %s28 = sshll.u32 [#allocation2], 4
      %s29 = int_to_ptr.vmem [resolvable:$true] %s28
      %34 = dma.hbm_to_vmem [thread:$0]  %s27, 256, %s29, [#allocation3], 128, 128, 8
    $region5: #{tpu_custom_call.1} parent=1 // pred_fallthru
      _
    // Predicated region
    $region6: #{tpu_custom_call.1} parent=1 // pred_check
      _
    $region7: #{tpu_custom_call.1} parent=1 // pred_check_branch
      %36 = sbr.rel (0) target = $region9
    $region8: #{tpu_custom_call.1} parent=1 // pred_region
      %s37 = sadd.s32 0, 0
      %p38 = scmp.lt.s32.totalorder %s37, 0
      %s39 = scalar_select %p38, %s37, 0
      %s40 = smul.u32 2, %s39
      %42 = vsyncadd [#allocation6], 0
      %s43 = smul.addr %s40, 8
      %s44 = scalar_lea.hbm %s1, %s43
      %s45 = sshll.u32 %s44, 4
      %s46 = int_to_ptr.hbm [resolvable:$true] %s45
      %s47 = sshll.u32 [#allocation5], 4
      %s48 = int_to_ptr.vmem [resolvable:$true] %s47
      %53 = dma.hbm_to_vmem [thread:$0]  %s46, 256, %s48, [#allocation6], 128, 128, 8
    $region9: #{tpu_custom_call.1} parent=1 // pred_fallthru
      _
    // Predicated region
    $region10: #{tpu_custom_call.1} parent=1 // pred_check
      _
    $region11: #{tpu_custom_call.1} parent=1 // pred_check_branch
      %55 = sbr.rel (0) target = $region13
    $region12: #{tpu_custom_call.1} parent=1 // pred_region
      %s56 = sadd.s32 0, 0
      %p57 = scmp.lt.s32.totalorder %s56, 0
      %s58 = scalar_select %p57, %s56, 0
      %s59 = smul.u32 2, %s58
      %61 = vsyncadd [#allocation6], 0
      %s62 = smul.addr %s59, 8
      %s63 = scalar_lea.hbm %s2, %s62
      %s64 = sshll.u32 %s63, 4
      %s65 = int_to_ptr.hbm [resolvable:$true] %s64
      %s66 = sshll.u32 [#allocation7], 4
      %s67 = int_to_ptr.vmem [resolvable:$true] %s66
      %72 = dma.hbm_to_vmem [thread:$0]  %s65, 256, %s67, [#allocation6], 128, 128, 8
    $region13: #{tpu_custom_call.1} parent=1 // pred_fallthru
      _
    // Predicated region
    $region14: #{tpu_custom_call.1} parent=1 // pred_check
      _
    $region15: #{tpu_custom_call.1} parent=1 // pred_check_branch
      %74 = sbr.rel (0) target = $region17
    $region16: #{tpu_custom_call.1} parent=1 // pred_region
      %s75 = sadd.s32 0, 0
      %p76 = scmp.lt.s32.totalorder %s75, 0
      %s77 = scalar_select %p76, %s75, 0
      %s78 = smul.u32 2, %s77
      %80 = vsyncadd [#allocation9], 0
      %s81 = smul.addr %s78, 8
      %s82 = scalar_lea.hbm %s3, %s81
      %s83 = sshll.u32 %s82, 4
      %s84 = int_to_ptr.hbm [resolvable:$true] %s83
      %s85 = sshll.u32 [#allocation8], 4
      %s86 = int_to_ptr.vmem [resolvable:$true] %s85
      %91 = dma.hbm_to_vmem [thread:$0]  %s84, 256, %s86, [#allocation9], 128, 128, 8
    $region17: #{tpu_custom_call.1} parent=1 // pred_fallthru
      _
    // Predicated region
    $region18: #{tpu_custom_call.1} parent=1 // pred_check
      _
    $region19: #{tpu_custom_call.1} parent=1 // pred_check_branch
      %93 = sbr.rel (0) target = $region21
    $region20: #{tpu_custom_call.1} parent=1 // pred_region
      %95 = dma.done [#allocation3], 256
    $region21: #{tpu_custom_call.1} parent=1 // pred_fallthru
      _
    // Predicated region
    $region22: #{tpu_custom_call.1} parent=1 // pred_check
      _
    $region23: #{tpu_custom_call.1} parent=1 // pred_check_branch
      %97 = sbr.rel (0) target = $region25
    $region24: #{tpu_custom_call.1} parent=1 // pred_region
      %99 = dma.done [#allocation6], 256
    $region25: #{tpu_custom_call.1} parent=1 // pred_fallthru
      _
    // Predicated region
    $region26: #{tpu_custom_call.1} parent=1 // pred_check
      _
    $region27: #{tpu_custom_call.1} parent=1 // pred_check_branch
      %101 = sbr.rel (0) target = $region29
    $region28: #{tpu_custom_call.1} parent=1 // pred_region
      %103 = dma.done [#allocation6], 256
    $region29: #{tpu_custom_call.1} parent=1 // pred_fallthru
      _
    // Predicated region
    $region30: #{tpu_custom_call.1} parent=1 // pred_check
      _
    $region31: #{tpu_custom_call.1} parent=1 // pred_check_branch
      %105 = sbr.rel (0) target = $region33
    $region32: #{tpu_custom_call.1} parent=1 // pred_region
      %107 = dma.done [#allocation9], 256
    $region33: #{tpu_custom_call.1} parent=1 // pred_fallthru
      _
    %s108 = sadd.s32 0, 0
    %p109 = scmp.lt.s32.totalorder %s108, 0
    %s110 = scalar_select %p109, %s108, 0
    %s111 = smul.u32 2, %s110
    %s112 = sadd.s32 0, 0
    %p113 = scmp.lt.s32.totalorder %s112, 0
    %s114 = scalar_select %p113, %s112, 0
    %s115 = smul.u32 2, %s114
    %s116 = sadd.s32 0, 0
    %p117 = scmp.lt.s32.totalorder %s116, 0
    %s118 = scalar_select %p117, %s116, 0
    %s119 = smul.u32 2, %s118
    %s120 = sadd.s32 0, 0
    %p121 = scmp.lt.s32.totalorder %s120, 0
    %s122 = scalar_select %p121, %s120, 0
    %s123 = smul.u32 2, %s122
    %p124 = scmp.eq.s32.totalorder 0, 0
    // Predicated region
    $region34: #{tpu_custom_call.1} parent=1 // pred_check
      %p125 = pneg %p124
    $region35: #{tpu_custom_call.1} parent=1 // pred_check_branch
      %127 = sbr.rel (%p125) target = $region37
    $region36: #{tpu_custom_call.1} parent=1 // pred_region
      %128 = vst [vmem:[#allocation10] sm:$0xff] 0.0
      %129 = vst [vmem:[#allocation10 + $0x8] sm:$0xff] 0.0
      %130 = vst [vmem:[#allocation11] sm:$0xff] 0.0
      %131 = vst [vmem:[#allocation11 + $0x8] sm:$0xff] 0.0
    $region37: #{tpu_custom_call.1} parent=1 // pred_fallthru
      _
    %s132 = sadd.s32 0, 0
    %v133 = vlaneseq
    %v134 = vshrl.u32 %v133, 7
    %v135 = vadd.s32 %v134, 8
    %v136 = vlaneseq
    %v137 = vand.u32 %v136, 127
    %s138 = smul.u32 %s132, 2048
    %v139 = vmul.u32 %v134, 128
    %v140 = vmul.u32 %v135, 128
    %v141 = vstv %s138
    %v142 = vadd.s32 %v141, %v139
    %v143 = vadd.s32 %v141, %v140
    %v144 = vadd.s32 %v142, %v137
    %v145 = vadd.s32 %v143, %v137
    %v146 = vld [vmem:[#allocation5] sm:$0xff]
    %v147 = vld [vmem:[#allocation5 + $0x8] sm:$0xff]
    %v148 = vld [vmem:[#allocation2] sm:$0xff]
    %v149 = vld [vmem:[#allocation2 + $0x8] sm:$0xff]
    %v150 = vsub.f32 %v146, %v148
    %v151 = vsub.f32 %v147, %v149
    %vm152 = vcmp.lt.s32.totalorder %v144, 2048
    %vm153 = vcmp.lt.s32.totalorder %v145, 2048
    %v154 = vmul.f32 %v150, %v150
    %v155 = vmul.f32 %v151, %v151
    %v156 = vsel %vm152, %v154, 0.0
    %v157 = vsel %vm153, %v155, 0.0
    %v158 = vld [vmem:[#allocation10] sm:$0xff]
    %v159 = vld [vmem:[#allocation10 + $0x8] sm:$0xff]
    %v160 = vadd.f32 %v158, %v156
    %v161 = vadd.f32 %v159, %v157
    %162 = vst [vmem:[#allocation10] sm:$0xff] %v160
    %163 = vst [vmem:[#allocation10 + $0x8] sm:$0xff] %v161
    %v164 = vld [vmem:[#allocation8] sm:$0xff]
    %v165 = vld [vmem:[#allocation8 + $0x8] sm:$0xff]
    %v166 = vld [vmem:[#allocation7] sm:$0xff]
    %v167 = vld [vmem:[#allocation7 + $0x8] sm:$0xff]
    %v168 = vmax.f32 %v164, 0.0
    %v169 = vmax.f32 %v165, 0.0
    %v170 = vmul.f32 %v164, %v166
    %v171 = vmul.f32 %v165, %v167
    %v172 = vsub.f32 %v168, %v170
    %v173 = vsub.f32 %v169, %v171
    %v174 = vand.u32 2147483647, %v164
    %v175 = vand.u32 2147483647, %v165
    %v176 = vsub.f32 0.0, %v174
    %v177 = vsub.f32 0.0, %v175
    %v178 = vmul.f32 %v176, 1.442695
    %v179 = vpow.pop %v178
    %v180 = vmul.f32 %v177, 1.442695
    %v181 = vpow.pop %v180
    %v182 = vadd.f32 %v179, 1.0
    %v183 = vlog2.pop %v182
    %v184 = vmul.f32 %v183, 0.6931472
    %v185 = vmul.f32 -0.5, %v179
    %v186 = vadd.f32 %v185, 1.0
    %v187 = vmul.f32 %v186, %v179
    %v188 = vand.u32 2147483647, %v179
    %vm189 = vcmp.lt.f32.partialorder %v188, 0.0004427343
    %v190 = vsel %vm189, %v187, %v184
    %v191 = vadd.f32 %v181, 1.0
    %v192 = vlog2.pop %v191
    %v193 = vmul.f32 %v192, 0.6931472
    %v194 = vmul.f32 -0.5, %v181
    %v195 = vadd.f32 %v194, 1.0
    %v196 = vmul.f32 %v195, %v181
    %v197 = vand.u32 2147483647, %v181
    %vm198 = vcmp.lt.f32.partialorder %v197, 0.0004427343
    %v199 = vsel %vm198, %v196, %v193
    %v200 = vadd.f32 %v172, %v190
    %v201 = vadd.f32 %v173, %v199
    %v202 = vsel %vm152, %v200, 0.0
    %v203 = vsel %vm153, %v201, 0.0
    %v204 = vld [vmem:[#allocation11] sm:$0xff]
    %v205 = vld [vmem:[#allocation11 + $0x8] sm:$0xff]
    %v206 = vadd.f32 %v204, %v202
    %v207 = vadd.f32 %v205, %v203
    %208 = vst [vmem:[#allocation11] sm:$0xff] %v206
    %209 = vst [vmem:[#allocation11 + $0x8] sm:$0xff] %v207
    // Predicated region
    $region38: #{tpu_custom_call.1} parent=1 // pred_check
      _
    $region39: #{tpu_custom_call.1} parent=1 // pred_check_branch
      %211 = sbr.rel (0) target = $region41
    $region40: #{tpu_custom_call.1} parent=1 // pred_region
      %213 = vsyncadd [#allocation4], 0
      %s214 = sshll.u32 [#allocation10], 4
      %s215 = int_to_ptr.vmem [resolvable:$true] %s214
      %s216 = sshll.u32 %s4, 4
      %s217 = int_to_ptr.hbm [resolvable:$true] %s216
      %222 = dma.vmem_to_hbm [thread:$0]  %s215, 256, %s217, [#allocation4], 128, 128, 8
    $region41: #{tpu_custom_call.1} parent=1 // pred_fallthru
      _
    // Predicated region
    $region42: #{tpu_custom_call.1} parent=1 // pred_check
      _
    $region43: #{tpu_custom_call.1} parent=1 // pred_check_branch
      %224 = sbr.rel (0) target = $region45
    $region44: #{tpu_custom_call.1} parent=1 // pred_region
      %226 = vsyncadd [#allocation12], 0
      %s227 = sshll.u32 [#allocation11], 4
      %s228 = int_to_ptr.vmem [resolvable:$true] %s227
      %s229 = sshll.u32 %s5, 4
      %s230 = int_to_ptr.hbm [resolvable:$true] %s229
      %235 = dma.vmem_to_hbm [thread:$0]  %s228, 256, %s230, [#allocation12], 128, 128, 8
    $region45: #{tpu_custom_call.1} parent=1 // pred_fallthru
      _
    // Predicated region
    $region46: #{tpu_custom_call.1} parent=1 // pred_check
      _
    $region47: #{tpu_custom_call.1} parent=1 // pred_check_branch
      %237 = sbr.rel (0) target = $region49
    $region48: #{tpu_custom_call.1} parent=1 // pred_region
      %239 = dma.done [#allocation4], 256
    $region49: #{tpu_custom_call.1} parent=1 // pred_fallthru
      _
    // Predicated region
    $region50: #{tpu_custom_call.1} parent=1 // pred_check
      _
    $region51: #{tpu_custom_call.1} parent=1 // pred_check_branch
      %241 = sbr.rel (0) target = $region53
    $region52: #{tpu_custom_call.1} parent=1 // pred_region
      %243 = dma.done [#allocation12], 256
    $region53: #{tpu_custom_call.1} parent=1 // pred_fallthru
      _
    %244 = vsyncpa [#allocation3], 1
    %245 = vsyncpa [#allocation6], 1
    %246 = vsyncpa [#allocation9], 1
    %247 = vsyncpa [#allocation4], 1
    %248 = vsyncpa [#allocation12], 1

</llo_original>
